<compile_context>
chip_gen: v5e
topology: v5e:2x2
jax: 0.10.0
libtpu: 0.0.40
codegen_flags: <defaults>
</compile_context>

<pallas_src>
import jax
import jax.numpy as jnp
from jax.experimental import pallas as pl
from jax.experimental.pallas import tpu as pltpu


def _make_vicreg_kernel(batch, feat_dim, lambd, mu, nu):
    inv_bm1 = 1.0 / float(batch - 1)

    def kernel(x_ref, w_ref, b_ref, o_ref,
               acc_sim, acc_std_a, acc_std_b, gram_a, gram_b):
        j = pl.program_id(0)

        @pl.when(j == 0)
        def _init():
            acc_sim[...] = jnp.zeros_like(acc_sim)
            acc_std_a[...] = jnp.zeros_like(acc_std_a)
            acc_std_b[...] = jnp.zeros_like(acc_std_b)
            gram_a[...] = jnp.zeros_like(gram_a)
            gram_b[...] = jnp.zeros_like(gram_b)
            o_ref[...] = jnp.zeros_like(o_ref)

        # synthetic net: linear layer, computed per lane-dense feature tile.
        feats = jnp.dot(x_ref[...], w_ref[...],
                        preferred_element_type=jnp.float32) + b_ref[...]
        z_a = feats[:batch, :]     # (B, TILE_D)
        z_b = feats[batch:, :]     # (B, TILE_D)

        # invariance term: accumulate squared diffs elementwise (VPU only).
        d = z_a - z_b
        acc_sim[...] += d * d

        # variance term: per-feature unbiased variance over the batch dim.
        def center_and_std(z, std_acc):
            zc = z - jnp.mean(z, axis=0, keepdims=True)              # (B, TILE_D)
            var = jnp.sum(zc * zc, axis=0, keepdims=True) * inv_bm1  # (1, TILE_D)
            std_acc[...] += jnp.maximum(1.0 - var, 0.0)
            return zc

        zc_a = center_and_std(z_a, acc_std_a)
        zc_b = center_and_std(z_b, acc_std_b)

        # covariance term: accumulate the (B, B) batch Gram over feature tiles.
        nt = (((1,), (1,)), ((), ()))   # contract the feature (lane) dim of both
        gram_a[...] += jax.lax.dot_general(zc_a, zc_a, nt,
                                           preferred_element_type=jnp.float32)
        gram_b[...] += jax.lax.dot_general(zc_b, zc_b, nt,
                                           preferred_element_type=jnp.float32)

        @pl.when(j == pl.num_programs(0) - 1)
        def _finalize():
            sim_loss = jnp.sum(acc_sim[...]) / float(batch * feat_dim)
            std_loss = (jnp.sum(acc_std_a[...])
                        + jnp.sum(acc_std_b[...])) / float(feat_dim)

            row = jax.lax.broadcasted_iota(jnp.int32, (batch, batch), 0)
            col = jax.lax.broadcasted_iota(jnp.int32, (batch, batch), 1)
            off_diag = row != col

            def cov_term(gram_ref):
                cov = gram_ref[...] * inv_bm1
                cov = jnp.where(off_diag, cov, 0.0)
                return jnp.sum(cov * cov) / float(feat_dim)

            cov_loss = cov_term(gram_a) + cov_term(gram_b)
            total = lambd * sim_loss + mu * std_loss + nu * cov_loss
            o_ref[...] = jnp.reshape(total, (1, 1))

    return kernel


def vicreg_loss(inputs, w, b, *, lambd=25.0, mu=25.0, nu=1.0, tile_d=None):
    """VICReg loss with net = linear layer: w (D_in, D), b (D,)."""
    x = jnp.concatenate([a.astype(jnp.float32) for a in inputs], axis=0)
    two_b, d_in = x.shape
    assert two_b % 2 == 0 and two_b >= 4, "need an even concatenated batch >= 4"
    batch = two_b // 2
    d_feat = w.shape[1]

    if tile_d is None:
        tile_d = min(d_feat, 512)        # big lane-dense tiles; fits VMEM on v5e/v6e/v7x
    if d_feat % tile_d != 0:
        tile_d = d_feat                  # fall back to one full-width tile

    w = w.astype(jnp.float32)
    b2 = b.reshape(1, d_feat).astype(jnp.float32)

    kernel = _make_vicreg_kernel(batch, d_feat, float(lambd), float(mu),
                                 float(nu))
    grid = (d_feat // tile_d,)

    out = pl.pallas_call(
        kernel,
        out_shape=jax.ShapeDtypeStruct((1, 1), jnp.float32),
        grid_spec=pltpu.PrefetchScalarGridSpec(
            num_scalar_prefetch=0,
            grid=grid,
            in_specs=[
                pl.BlockSpec((two_b, d_in), lambda j: (0, 0)),   # all samples
                pl.BlockSpec((d_in, tile_d), lambda j: (0, j)),  # W column tile
                pl.BlockSpec((1, tile_d), lambda j: (0, j)),     # bias tile
            ],
            out_specs=pl.BlockSpec((1, 1), lambda j: (0, 0)),    # scalar loss
            scratch_shapes=[
                pltpu.VMEM((batch, tile_d), jnp.float32),  # acc_sim
                pltpu.VMEM((1, tile_d), jnp.float32),      # acc_std_a
                pltpu.VMEM((1, tile_d), jnp.float32),      # acc_std_b
                pltpu.VMEM((batch, batch), jnp.float32),   # gram_a
                pltpu.VMEM((batch, batch), jnp.float32),   # gram_b
            ],
        ),
        compiler_params=pltpu.CompilerParams(
            dimension_semantics=("arbitrary",)),   # reduction axis, resident scratch
    )(x, w, b2)
    return out[0, 0]


if __name__ == "__main__":
    key = jax.random.PRNGKey(0)
    k1, k2, kw, kb = jax.random.split(key, 4)

    B, D_IN, D_FEAT = 8, 32, 256
    LAMBD, MU, NU = 25.0, 25.0, 1.0

    view_a = jax.random.normal(k1, (B, D_IN), dtype=jnp.float32)
    view_b = jax.random.normal(k2, (B, D_IN), dtype=jnp.float32)

    # deterministic synthetic-net parameters (linear: D_IN -> D_FEAT)
    w = jax.random.normal(kw, (D_IN, D_FEAT), dtype=jnp.float32) * 0.1
    b = jax.random.normal(kb, (D_FEAT,), dtype=jnp.float32) * 0.1

    loss = vicreg_loss([view_a, view_b], w, b,
                       lambd=LAMBD, mu=MU, nu=NU, tile_d=128)  # 2 grid steps
    loss = jax.block_until_ready(loss)

    # pure-JAX reference mirroring the PyTorch module (no Pallas)
    hi = jax.lax.Precision.HIGHEST
    x_cat = jnp.concatenate([view_a, view_b], axis=0)
    feats = jnp.dot(x_cat, w, precision=hi) + b
    z_a, z_b = feats[:B], feats[B:]

    sim_ref = jnp.mean((z_a - z_b) ** 2)

    def std_ref(z):
        var = jnp.var(z, axis=0, ddof=1)
        return jnp.mean(jnp.maximum(1.0 - var, 0.0))

    def cov_ref(z):
        zc = z - jnp.mean(z, axis=0, keepdims=True)
        cov = jnp.dot(zc, zc.T, precision=hi) / (B - 1)
        mask = 1.0 - jnp.eye(B, dtype=jnp.float32)
        return jnp.sum((mask * cov) ** 2) / z.shape[1]

    ref = (LAMBD * sim_ref + MU * (std_ref(z_a) + std_ref(z_b))
           + NU * (cov_ref(z_a) + cov_ref(z_b)))

    assert jnp.allclose(loss, ref, rtol=2e-3, atol=1e-3), (loss, ref)
    print("KERNEL_OK")
</pallas_src>

<mosaic_0001>
module attributes {stable_mosaic.version = 11 : i64} {
  func.func @kernel(%arg0: i32, %arg1: memref<16x32xf32, #tpu.memory_space<vmem>>, %arg2: memref<32x128xf32, #tpu.memory_space<vmem>>, %arg3: memref<1x128xf32, #tpu.memory_space<vmem>>, %arg4: memref<1x1xf32, #tpu.memory_space<vmem>>, %arg5: memref<8x128xf32, #tpu.memory_space<vmem>>, %arg6: memref<1x128xf32, #tpu.memory_space<vmem>>, %arg7: memref<1x128xf32, #tpu.memory_space<vmem>>, %arg8: memref<8x8xf32, #tpu.memory_space<vmem>>, %arg9: memref<8x8xf32, #tpu.memory_space<vmem>>) attributes {dimension_semantics = [#tpu.dimension_semantics<arbitrary>], iteration_bounds = array<i64: 2>, scalar_prefetch = 0 : i64, scratch_operands = 5 : i64, tpu.core_type = #tpu.core_type<tc>, window_params = [{pipeline_mode = #tpu.pipeline_mode<synchronous>, transform_indices = @transform_0, window_bounds = array<i64: 16, 32>}, {transform_indices = @transform_1, window_bounds = array<i64: 32, 128>}, {transform_indices = @transform_2, window_bounds = array<i64: 1, 128>}, {pipeline_mode = #tpu.pipeline_mode<synchronous>, transform_indices = @transform_3, window_bounds = array<i64: 1, 1>}]} {
    %c0_i32 = arith.constant 0 : i32
    %0 = arith.cmpi eq, %arg0, %c0_i32 : i32
    %1 = arith.extui %0 : i1 to i32
    %c0_i32_0 = arith.constant 0 : i32
    %2 = arith.cmpi ne, %1, %c0_i32_0 : i32
    scf.if %2 {
      %cst_41 = arith.constant 0.000000e+00 : f32
      %63 = vector.broadcast %cst_41 : f32 to vector<8x128xf32>
      %c0_42 = arith.constant 0 : index
      %c0_43 = arith.constant 0 : index
      %64 = vector.load %arg5[%c0_42, %c0_43] : memref<8x128xf32, #tpu.memory_space<vmem>>, vector<8x128xf32>
      tpu.vector_store %arg5[%c0_42, %c0_43], %63 {strides = array<i32>} : memref<8x128xf32, #tpu.memory_space<vmem>>, vector<8x128xf32>,
      %cst_44 = arith.constant 0.000000e+00 : f32
      %65 = vector.broadcast %cst_44 : f32 to vector<1x128xf32>
      %c0_45 = arith.constant 0 : index
      %c0_46 = arith.constant 0 : index
      %66 = vector.load %arg6[%c0_45, %c0_46] : memref<1x128xf32, #tpu.memory_space<vmem>>, vector<1x128xf32>
      tpu.vector_store %arg6[%c0_45, %c0_46], %65 {strides = array<i32>} : memref<1x128xf32, #tpu.memory_space<vmem>>, vector<1x128xf32>,
      %cst_47 = arith.constant 0.000000e+00 : f32
      %67 = vector.broadcast %cst_47 : f32 to vector<1x128xf32>
      %c0_48 = arith.constant 0 : index
      %c0_49 = arith.constant 0 : index
      %68 = vector.load %arg7[%c0_48, %c0_49] : memref<1x128xf32, #tpu.memory_space<vmem>>, vector<1x128xf32>
      tpu.vector_store %arg7[%c0_48, %c0_49], %67 {strides = array<i32>} : memref<1x128xf32, #tpu.memory_space<vmem>>, vector<1x128xf32>,
      %cst_50 = arith.constant 0.000000e+00 : f32
      %69 = vector.broadcast %cst_50 : f32 to vector<8x8xf32>
      %c0_51 = arith.constant 0 : index
      %c0_52 = arith.constant 0 : index
      %70 = vector.load %arg8[%c0_51, %c0_52] : memref<8x8xf32, #tpu.memory_space<vmem>>, vector<8x8xf32>
      tpu.vector_store %arg8[%c0_51, %c0_52], %69 {strides = array<i32>} : memref<8x8xf32, #tpu.memory_space<vmem>>, vector<8x8xf32>,
      %cst_53 = arith.constant 0.000000e+00 : f32
      %71 = vector.broadcast %cst_53 : f32 to vector<8x8xf32>
      %c0_54 = arith.constant 0 : index
      %c0_55 = arith.constant 0 : index
      %72 = vector.load %arg9[%c0_54, %c0_55] : memref<8x8xf32, #tpu.memory_space<vmem>>, vector<8x8xf32>
      tpu.vector_store %arg9[%c0_54, %c0_55], %71 {strides = array<i32>} : memref<8x8xf32, #tpu.memory_space<vmem>>, vector<8x8xf32>,
      %cst_56 = arith.constant 0.000000e+00 : f32
      %73 = vector.broadcast %cst_56 : f32 to vector<1x1xf32>
      %c0_57 = arith.constant 0 : index
      %c0_58 = arith.constant 0 : index
      %74 = vector.load %arg4[%c0_57, %c0_58] : memref<1x1xf32, #tpu.memory_space<vmem>>, vector<1x1xf32>
      tpu.vector_store %arg4[%c0_57, %c0_58], %73 {strides = array<i32>} : memref<1x1xf32, #tpu.memory_space<vmem>>, vector<1x1xf32>,
    } else {
    }
    %c0 = arith.constant 0 : index
    %c0_1 = arith.constant 0 : index
    %3 = vector.load %arg1[%c0, %c0_1] : memref<16x32xf32, #tpu.memory_space<vmem>>, vector<16x32xf32>
    %c0_2 = arith.constant 0 : index
    %c0_3 = arith.constant 0 : index
    %4 = vector.load %arg2[%c0_2, %c0_3] : memref<32x128xf32, #tpu.memory_space<vmem>>, vector<32x128xf32>
    %cst = arith.constant dense<0.000000e+00> : vector<16x128xf32>
    %5 = tpu.matmul %3, %4, %cst {dimension_numbers = #tpu.dot_dimension_numbers<[1], [0], [0], [1], [0, 0, 1, 1], [], []>} : vector<16x32xf32>, vector<32x128xf32>, vector<16x128xf32> -> vector<16x128xf32>
    %c0_4 = arith.constant 0 : index
    %c0_5 = arith.constant 0 : index
    %6 = vector.load %arg3[%c0_4, %c0_5] : memref<1x128xf32, #tpu.memory_space<vmem>>, vector<1x128xf32>
    %7 = vector.broadcast %6 : vector<1x128xf32> to vector<16x128xf32>
    %8 = arith.addf %5, %7 : vector<16x128xf32>
    %9 = vector.extract_strided_slice %8 {offsets = [0, 0], sizes = [8, 128], strides = [1, 1]} : vector<16x128xf32> to vector<8x128xf32>
    %10 = vector.extract_strided_slice %8 {offsets = [8, 0], sizes = [8, 128], strides = [1, 1]} : vector<16x128xf32> to vector<8x128xf32>
    %11 = arith.subf %9, %10 : vector<8x128xf32>
    %c0_6 = arith.constant 0 : index
    %c0_7 = arith.constant 0 : index
    %12 = vector.load %arg5[%c0_6, %c0_7] : memref<8x128xf32, #tpu.memory_space<vmem>>, vector<8x128xf32>
    %13 = arith.mulf %11, %11 : vector<8x128xf32>
    %14 = arith.addf %12, %13 : vector<8x128xf32>
    %c0_8 = arith.constant 0 : index
    %c0_9 = arith.constant 0 : index
    %15 = vector.load %arg5[%c0_8, %c0_9] : memref<8x128xf32, #tpu.memory_space<vmem>>, vector<8x128xf32>
    tpu.vector_store %arg5[%c0_8, %c0_9], %14 {strides = array<i32>} : memref<8x128xf32, #tpu.memory_space<vmem>>, vector<8x128xf32>,
    %cst_10 = arith.constant dense<0.000000e+00> : vector<128xf32>
    %16 = vector.multi_reduction <add>, %9, %cst_10 [0] : vector<8x128xf32> to vector<128xf32>
    %17 = vector.shape_cast %16 : vector<128xf32> to vector<1x128xf32>
    %cst_11 = arith.constant 8.000000e+00 : f32
    %18 = vector.broadcast %cst_11 : f32 to vector<1x128xf32>
    %19 = arith.divf %17, %18 : vector<1x128xf32>
    %20 = vector.broadcast %19 : vector<1x128xf32> to vector<8x128xf32>
    %21 = arith.subf %9, %20 : vector<8x128xf32>
    %22 = arith.mulf %21, %21 : vector<8x128xf32>
    %cst_12 = arith.constant dense<0.000000e+00> : vector<128xf32>
    %23 = vector.multi_reduction <add>, %22, %cst_12 [0] : vector<8x128xf32> to vector<128xf32>
    %24 = vector.shape_cast %23 : vector<128xf32> to vector<1x128xf32>
    %cst_13 = arith.constant 0.142857149 : f32
    %25 = vector.broadcast %cst_13 : f32 to vector<1x128xf32>
    %26 = arith.mulf %24, %25 : vector<1x128xf32>
    %c0_14 = arith.constant 0 : index
    %c0_15 = arith.constant 0 : index
    %27 = vector.load %arg6[%c0_14, %c0_15] : memref<1x128xf32, #tpu.memory_space<vmem>>, vector<1x128xf32>
    %cst_16 = arith.constant 1.000000e+00 : f32
    %28 = vector.broadcast %cst_16 : f32 to vector<1x128xf32>
    %29 = arith.subf %28, %26 : vector<1x128xf32>
    %cst_17 = arith.constant 0.000000e+00 : f32
    %30 = vector.broadcast %cst_17 : f32 to vector<1x128xf32>
    %31 = arith.maximumf %29, %30 : vector<1x128xf32>
    %32 = arith.addf %27, %31 : vector<1x128xf32>
    %c0_18 = arith.constant 0 : index
    %c0_19 = arith.constant 0 : index
    %33 = vector.load %arg6[%c0_18, %c0_19] : memref<1x128xf32, #tpu.memory_space<vmem>>, vector<1x128xf32>
    tpu.vector_store %arg6[%c0_18, %c0_19], %32 {strides = array<i32>} : memref<1x128xf32, #tpu.memory_space<vmem>>, vector<1x128xf32>,
    %cst_20 = arith.constant dense<0.000000e+00> : vector<128xf32>
    %34 = vector.multi_reduction <add>, %10, %cst_20 [0] : vector<8x128xf32> to vector<128xf32>
    %35 = vector.shape_cast %34 : vector<128xf32> to vector<1x128xf32>
    %cst_21 = arith.constant 8.000000e+00 : f32
    %36 = vector.broadcast %cst_21 : f32 to vector<1x128xf32>
    %37 = arith.divf %35, %36 : vector<1x128xf32>
    %38 = vector.broadcast %37 : vector<1x128xf32> to vector<8x128xf32>
    %39 = arith.subf %10, %38 : vector<8x128xf32>
    %40 = arith.mulf %39, %39 : vector<8x128xf32>
    %cst_22 = arith.constant dense<0.000000e+00> : vector<128xf32>
    %41 = vector.multi_reduction <add>, %40, %cst_22 [0] : vector<8x128xf32> to vector<128xf32>
    %42 = vector.shape_cast %41 : vector<128xf32> to vector<1x128xf32>
    %cst_23 = arith.constant 0.142857149 : f32
    %43 = vector.broadcast %cst_23 : f32 to vector<1x128xf32>
    %44 = arith.mulf %42, %43 : vector<1x128xf32>
    %c0_24 = arith.constant 0 : index
    %c0_25 = arith.constant 0 : index
    %45 = vector.load %arg7[%c0_24, %c0_25] : memref<1x128xf32, #tpu.memory_space<vmem>>, vector<1x128xf32>
    %cst_26 = arith.constant 1.000000e+00 : f32
    %46 = vector.broadcast %cst_26 : f32 to vector<1x128xf32>
    %47 = arith.subf %46, %44 : vector<1x128xf32>
    %cst_27 = arith.constant 0.000000e+00 : f32
    %48 = vector.broadcast %cst_27 : f32 to vector<1x128xf32>
    %49 = arith.maximumf %47, %48 : vector<1x128xf32>
    %50 = arith.addf %45, %49 : vector<1x128xf32>
    %c0_28 = arith.constant 0 : index
    %c0_29 = arith.constant 0 : index
    %51 = vector.load %arg7[%c0_28, %c0_29] : memref<1x128xf32, #tpu.memory_space<vmem>>, vector<1x128xf32>
    tpu.vector_store %arg7[%c0_28, %c0_29], %50 {strides = array<i32>} : memref<1x128xf32, #tpu.memory_space<vmem>>, vector<1x128xf32>,
    %c0_30 = arith.constant 0 : index
    %c0_31 = arith.constant 0 : index
    %52 = vector.load %arg8[%c0_30, %c0_31] : memref<8x8xf32, #tpu.memory_space<vmem>>, vector<8x8xf32>
    %cst_32 = arith.constant dense<0.000000e+00> : vector<8x8xf32>
    %53 = tpu.matmul %21, %21, %cst_32 {dimension_numbers = #tpu.dot_dimension_numbers<[1], [1], [0], [0], [0, 0, 1, 0], [], []>} : vector<8x128xf32>, vector<8x128xf32>, vector<8x8xf32> -> vector<8x8xf32>
    %54 = arith.addf %52, %53 : vector<8x8xf32>
    %c0_33 = arith.constant 0 : index
    %c0_34 = arith.constant 0 : index
    %55 = vector.load %arg8[%c0_33, %c0_34] : memref<8x8xf32, #tpu.memory_space<vmem>>, vector<8x8xf32>
    tpu.vector_store %arg8[%c0_33, %c0_34], %54 {strides = array<i32>} : memref<8x8xf32, #tpu.memory_space<vmem>>, vector<8x8xf32>,
    %c0_35 = arith.constant 0 : index
    %c0_36 = arith.constant 0 : index
    %56 = vector.load %arg9[%c0_35, %c0_36] : memref<8x8xf32, #tpu.memory_space<vmem>>, vector<8x8xf32>
    %cst_37 = arith.constant dense<0.000000e+00> : vector<8x8xf32>
    %57 = tpu.matmul %39, %39, %cst_37 {dimension_numbers = #tpu.dot_dimension_numbers<[1], [1], [0], [0], [0, 0, 1, 0], [], []>} : vector<8x128xf32>, vector<8x128xf32>, vector<8x8xf32> -> vector<8x8xf32>
    %58 = arith.addf %56, %57 : vector<8x8xf32>
    %c0_38 = arith.constant 0 : index
    %c0_39 = arith.constant 0 : index
    %59 = vector.load %arg9[%c0_38, %c0_39] : memref<8x8xf32, #tpu.memory_space<vmem>>, vector<8x8xf32>
    tpu.vector_store %arg9[%c0_38, %c0_39], %58 {strides = array<i32>} : memref<8x8xf32, #tpu.memory_space<vmem>>, vector<8x8xf32>,
    %c1_i32 = arith.constant 1 : i32
    %60 = arith.cmpi eq, %arg0, %c1_i32 : i32
    %61 = arith.extui %60 : i1 to i32
    %c0_i32_40 = arith.constant 0 : i32
    %62 = arith.cmpi ne, %61, %c0_i32_40 : i32
    scf.if %62 {
      %c0_41 = arith.constant 0 : index
      %c0_42 = arith.constant 0 : index
      %63 = vector.load %arg5[%c0_41, %c0_42] : memref<8x128xf32, #tpu.memory_space<vmem>>, vector<8x128xf32>
      %64 = vector.shape_cast %63 : vector<8x128xf32> to vector<1x8x128xf32>
      %cst_43 = arith.constant dense<0.000000e+00> : vector<1xf32>
      %65 = vector.multi_reduction <add>, %64, %cst_43 [1, 2] : vector<1x8x128xf32> to vector<1xf32>
      %66 = vector.shape_cast %65 : vector<1xf32> to vector<1x1x1xf32>
      %67 = vector.extract %66[0, 0, 0] : f32 from vector<1x1x1xf32>
      %cst_44 = arith.constant 2.048000e+03 : f32
      %68 = arith.divf %67, %cst_44 : f32
      %c0_45 = arith.constant 0 : index
      %c0_46 = arith.constant 0 : index
      %69 = vector.load %arg6[%c0_45, %c0_46] : memref<1x128xf32, #tpu.memory_space<vmem>>, vector<1x128xf32>
      %70 = vector.shape_cast %69 : vector<1x128xf32> to vector<1x1x128xf32>
      %cst_47 = arith.constant dense<0.000000e+00> : vector<1xf32>
      %71 = vector.multi_reduction <add>, %70, %cst_47 [1, 2] : vector<1x1x128xf32> to vector<1xf32>
      %72 = vector.shape_cast %71 : vector<1xf32> to vector<1x1x1xf32>
      %73 = vector.extract %72[0, 0, 0] : f32 from vector<1x1x1xf32>
      %c0_48 = arith.constant 0 : index
      %c0_49 = arith.constant 0 : index
      %74 = vector.load %arg7[%c0_48, %c0_49] : memref<1x128xf32, #tpu.memory_space<vmem>>, vector<1x128xf32>
      %75 = vector.shape_cast %74 : vector<1x128xf32> to vector<1x1x128xf32>
      %cst_50 = arith.constant dense<0.000000e+00> : vector<1xf32>
      %76 = vector.multi_reduction <add>, %75, %cst_50 [1, 2] : vector<1x1x128xf32> to vector<1xf32>
      %77 = vector.shape_cast %76 : vector<1xf32> to vector<1x1x1xf32>
      %78 = vector.extract %77[0, 0, 0] : f32 from vector<1x1x1xf32>
      %79 = arith.addf %73, %78 : f32
      %cst_51 = arith.constant 2.560000e+02 : f32
      %80 = arith.divf %79, %cst_51 : f32
      %81 = tpu.iota {dimensions = array<i32: 0>} : vector<8x8xi32>
      %82 = tpu.iota {dimensions = array<i32: 1>} : vector<8x8xi32>
      %83 = arith.cmpi ne, %81, %82 : vector<8x8xi32>
      %c0_52 = arith.constant 0 : index
      %c0_53 = arith.constant 0 : index
      %84 = vector.load %arg8[%c0_52, %c0_53] : memref<8x8xf32, #tpu.memory_space<vmem>>, vector<8x8xf32>
      %cst_54 = arith.constant 0.142857149 : f32
      %85 = vector.broadcast %cst_54 : f32 to vector<8x8xf32>
      %86 = arith.mulf %84, %85 : vector<8x8xf32>
      %cst_55 = arith.constant 0.000000e+00 : f32
      %87 = vector.broadcast %cst_55 : f32 to vector<8x8xf32>
      %88 = arith.select %83, %86, %87 : vector<8x8xi1>, vector<8x8xf32>
      %89 = arith.mulf %88, %88 : vector<8x8xf32>
      %90 = vector.shape_cast %89 : vector<8x8xf32> to vector<1x8x8xf32>
      %cst_56 = arith.constant dense<0.000000e+00> : vector<1xf32>
      %91 = vector.multi_reduction <add>, %90, %cst_56 [1, 2] : vector<1x8x8xf32> to vector<1xf32>
      %92 = vector.shape_cast %91 : vector<1xf32> to vector<1x1x1xf32>
      %93 = vector.extract %92[0, 0, 0] : f32 from vector<1x1x1xf32>
      %cst_57 = arith.constant 2.560000e+02 : f32
      %94 = arith.divf %93, %cst_57 : f32
      %c0_58 = arith.constant 0 : index
      %c0_59 = arith.constant 0 : index
      %95 = vector.load %arg9[%c0_58, %c0_59] : memref<8x8xf32, #tpu.memory_space<vmem>>, vector<8x8xf32>
      %cst_60 = arith.constant 0.142857149 : f32
      %96 = vector.broadcast %cst_60 : f32 to vector<8x8xf32>
      %97 = arith.mulf %95, %96 : vector<8x8xf32>
      %cst_61 = arith.constant 0.000000e+00 : f32
      %98 = vector.broadcast %cst_61 : f32 to vector<8x8xf32>
      %99 = arith.select %83, %97, %98 : vector<8x8xi1>, vector<8x8xf32>
      %100 = arith.mulf %99, %99 : vector<8x8xf32>
      %101 = vector.shape_cast %100 : vector<8x8xf32> to vector<1x8x8xf32>
      %cst_62 = arith.constant dense<0.000000e+00> : vector<1xf32>
      %102 = vector.multi_reduction <add>, %101, %cst_62 [1, 2] : vector<1x8x8xf32> to vector<1xf32>
      %103 = vector.shape_cast %102 : vector<1xf32> to vector<1x1x1xf32>
      %104 = vector.extract %103[0, 0, 0] : f32 from vector<1x1x1xf32>
      %cst_63 = arith.constant 2.560000e+02 : f32
      %105 = arith.divf %104, %cst_63 : f32
      %106 = arith.addf %94, %105 : f32
      %cst_64 = arith.constant 2.500000e+01 : f32
      %107 = arith.mulf %cst_64, %68 : f32
      %cst_65 = arith.constant 2.500000e+01 : f32
      %108 = arith.mulf %cst_65, %80 : f32
      %109 = arith.addf %107, %108 : f32
      %cst_66 = arith.constant 1.000000e+00 : f32
      %110 = arith.mulf %cst_66, %106 : f32
      %111 = arith.addf %109, %110 : f32
      %112 = vector.broadcast %111 : f32 to vector<1x1xf32>
      %c0_67 = arith.constant 0 : index
      %c0_68 = arith.constant 0 : index
      %113 = vector.load %arg4[%c0_67, %c0_68] : memref<1x1xf32, #tpu.memory_space<vmem>>, vector<1x1xf32>
      tpu.vector_store %arg4[%c0_67, %c0_68], %112 {strides = array<i32>} : memref<1x1xf32, #tpu.memory_space<vmem>>, vector<1x1xf32>,
    } else {
    }
    return
  }
  func.func @transform_0(%arg0: i32) -> (i32, i32) {
    %c0_i32 = arith.constant 0 : i32
    %c0_i32_0 = arith.constant 0 : i32
    %c0_i32_1 = arith.constant 0 : i32
    return %c0_i32, %c0_i32_0 : i32, i32
  }
  func.func @transform_1(%arg0: i32) -> (i32, i32) {
    %c0_i32 = arith.constant 0 : i32
    %c0_i32_0 = arith.constant 0 : i32
    return %c0_i32, %arg0 : i32, i32
  }
  func.func @transform_2(%arg0: i32) -> (i32, i32) {
    %c0_i32 = arith.constant 0 : i32
    %c0_i32_0 = arith.constant 0 : i32
    return %c0_i32, %arg0 : i32, i32
  }
  func.func @transform_3(%arg0: i32) -> (i32, i32) {
    %c0_i32 = arith.constant 0 : i32
    %c0_i32_0 = arith.constant 0 : i32
    %c0_i32_1 = arith.constant 0 : i32
    return %c0_i32, %c0_i32_0 : i32, i32
  }
}

</mosaic_0001>

<llo_original>
// kernel: tpu_custom_call.1
$region0: #{tpu_custom_call.1}
  #allocation0 [shape = 'u32[]', space=smem, size = 0x4, offset = 0x4, fixed_abs, tag = 'smem constant byte address 0x4 - core index']
  #allocation1 [shape = 'u32[72,128]{1,0:T(1,128)}', space=vmem, size = 0x9000, scoped, tag = 'internal scratch']
  #allocation2 [shape = 'f32[8,128]{1,0:T(8,128)}', space=vmem, size = 0x1000, scoped, tag = 'scratch operand']
  #allocation3 [shape = 'f32[1,128]{1,0:T(1,128)}', space=vmem, size = 0x200, scoped, tag = 'scratch operand']
  #allocation4 [shape = 'f32[1,128]{1,0:T(1,128)}', space=vmem, size = 0x200, scoped, tag = 'scratch operand']
  #allocation5 [shape = 'f32[8,8]{1,0:T(8,128)}', space=vmem, size = 0x1000, scoped, tag = 'scratch operand']
  #allocation6 [shape = 'f32[8,8]{1,0:T(8,128)}', space=vmem, size = 0x1000, scoped, tag = 'scratch operand']
  %s0 = inlined_call_operand.hbm [shape: f32[16,32], index: 0, kind: input, shape index: {}]
  %s1 = inlined_call_operand.hbm [shape: f32[32,256], index: 1, kind: input, shape index: {}]
  %s2 = inlined_call_operand.hbm [shape: f32[1,256], index: 2, kind: input, shape index: {}]
  %s3 = inlined_call_operand.hbm [shape: f32[1,1], index: 3, kind: output, shape index: {}]
  %s4 = sld [smem:[#allocation0]]
  $region65: #{tpu_custom_call.1} parent=0
    _
  %s6 = ssub.s32 1, %s4
  %s7 = scalar_select 0, %s6, %s4
  $region1: #{tpu_custom_call.1} parent=0
    #allocation7 [shape = 'u8[8192]{0}', space=vmem, size = 0x2000, scoped, tag = 'input window, operand 0, single buffered']
    #allocation8 [shape = 's32[2]{0}', space=sflag, size = 0x8, scoped, tag = 'scoped memory for tpu_custom_call.1']
    #allocation9 [shape = 's32[2]{0}', space=sflag, size = 0x8, scoped, tag = 'scoped memory for tpu_custom_call.1']
    #allocation10 [shape = 'u8[32768]{0}', space=vmem, size = 0x8000, scoped, tag = 'input window, operand 1']
    #allocation11 [shape = 's32[2]{0}', space=sflag, size = 0x8, scoped, tag = 'scoped memory for tpu_custom_call.1']
    #allocation12 [shape = 'u8[1024]{0}', space=vmem, size = 0x400, scoped, tag = 'input window, operand 2']
    #allocation13 [shape = 'u8[512]{0}', space=vmem, size = 0x400, scoped, tag = 'output window, operand 0, single buffered']
    %8 = vsyncpa [#allocation8], 0
    %9 = vsyncpa [#allocation11], 0
    %s10 = scalar_lea.sflag [#allocation11], 1
    %11 = vsyncpa %s10, 0
    %12 = vsyncpa [#allocation9], 0
    loop: start=0, step=1, limit=4
    $region2: #{tpu_custom_call.1} parent=1 // loop_pre_header
      _
    $region3: #{tpu_custom_call.1} parent=1 // loop_header
      %s14 = sphi 0, %s18
      %p15 = scmp.ge.s32.totalorder %s14, 4
      %s22 = sphi 0, %s22
      %s24 = sphi 0, %s22
      %s25 = sphi 0, %s24
      %s39 = sphi 0, %s25
      %s45 = sphi 0, %s47
      %s48 = sphi 0, %s45
      %s49 = sphi 0, %s48
      %s65 = sphi 0, %s49
      %s71 = sphi 0, %s73
      %s74 = sphi 0, %s71
      %s75 = sphi 0, %s74
      %s91 = sphi 0, %s75
      %s95 = sphi 0, %s95
      %s97 = sphi 0, %s95
      %s98 = sphi 0, %s97
      %s112 = sphi 0, %s98
    $region4: #{tpu_custom_call.1} parent=1 // loop_header_branch
      %17 = sbr.rel (%p15) target = $region8
    $region5: #{tpu_custom_call.1} parent=1 // loop_body
      %s19 = ssub.s32 %s14, 1
      %s20 = ssub.s32 %s14, 2
      %s21 = sadd.s32 %s14, 1
      %s23 = sadd.s32 %s22, 1
      %p26 = scmp.eq.s32.totalorder %s14, 1
      %p27 = scmp.ne.s32.totalorder %s22, %s24
      %p28 = scmp.eq.s32.totalorder %s14, 0
      %p29 = por %p27, %p28
      %p30 = scmp.ne.s32.totalorder %s22, %s24
      %p31 = scmp.eq.s32.totalorder %s19, 1
      %p32 = por %p30, %p31
      %p33 = scmp.ne.s32.totalorder %s24, %s25
      %p34 = scmp.eq.s32.totalorder %s19, 0
      %p35 = por %p33, %p34
      %p36 = scmp.ne.s32.totalorder %s24, %s25
      %p37 = scmp.eq.s32.totalorder %s20, 1
      %p38 = por %p36, %p37
      %p40 = scmp.ne.s32.totalorder %s25, %s39
      %p41 = scmp.eq.s32.totalorder %s20, 0
      %p42 = por %p40, %p41
      %s43 = ssub.s32 %s14, %s21
      %p44 = scmp.eq.s32.totalorder %s43, 0
      %s46 = sadd.s32 %s45, 1
      %s47 = scalar_select %p44, %s45, %s46
      %p50 = pneg %p44
      %p51 = scmp.eq.s32.totalorder %s14, 1
      %p52 = por %p50, %p51
      %p53 = scmp.ne.s32.totalorder %s45, %s48
      %p54 = scmp.eq.s32.totalorder %s14, 0
      %p55 = por %p53, %p54
      %p56 = scmp.ne.s32.totalorder %s45, %s48
      %p57 = scmp.eq.s32.totalorder %s19, 1
      %p58 = por %p56, %p57
      %p59 = scmp.ne.s32.totalorder %s48, %s49
      %p60 = scmp.eq.s32.totalorder %s19, 0
      %p61 = por %p59, %p60
      %p62 = scmp.ne.s32.totalorder %s48, %s49
      %p63 = scmp.eq.s32.totalorder %s20, 1
      %p64 = por %p62, %p63
      %p66 = scmp.ne.s32.totalorder %s49, %s65
      %p67 = scmp.eq.s32.totalorder %s20, 0
      %p68 = por %p66, %p67
      %s69 = ssub.s32 %s14, %s21
      %p70 = scmp.eq.s32.totalorder %s69, 0
      %s72 = sadd.s32 %s71, 1
      %s73 = scalar_select %p70, %s71, %s72
      %p76 = pneg %p70
      %p77 = scmp.eq.s32.totalorder %s14, 1
      %p78 = por %p76, %p77
      %p79 = scmp.ne.s32.totalorder %s71, %s74
      %p80 = scmp.eq.s32.totalorder %s14, 0
      %p81 = por %p79, %p80
      %p82 = scmp.ne.s32.totalorder %s71, %s74
      %p83 = scmp.eq.s32.totalorder %s19, 1
      %p84 = por %p82, %p83
      %p85 = scmp.ne.s32.totalorder %s74, %s75
      %p86 = scmp.eq.s32.totalorder %s19, 0
      %p87 = por %p85, %p86
      %p88 = scmp.ne.s32.totalorder %s74, %s75
      %p89 = scmp.eq.s32.totalorder %s20, 1
      %p90 = por %p88, %p89
      %p92 = scmp.ne.s32.totalorder %s75, %s91
      %p93 = scmp.eq.s32.totalorder %s20, 0
      %p94 = por %p92, %p93
      %s96 = sadd.s32 %s95, 1
      %p99 = scmp.eq.s32.totalorder %s14, 1
      %p100 = scmp.ne.s32.totalorder %s95, %s97
      %p101 = scmp.eq.s32.totalorder %s14, 0
      %p102 = por %p100, %p101
      %p103 = scmp.ne.s32.totalorder %s95, %s97
      %p104 = scmp.eq.s32.totalorder %s19, 1
      %p105 = por %p103, %p104
      %p106 = scmp.ne.s32.totalorder %s97, %s98
      %p107 = scmp.eq.s32.totalorder %s19, 0
      %p108 = por %p106, %p107
      %p109 = scmp.ne.s32.totalorder %s97, %s98
      %p110 = scmp.eq.s32.totalorder %s20, 1
      %p111 = por %p109, %p110
      %p113 = scmp.ne.s32.totalorder %s98, %s112
      %p114 = scmp.eq.s32.totalorder %s20, 0
      %p115 = por %p113, %p114
      %p116 = scmp.le.s32.totalorder 1, %s14
      %p117 = scmp.lt.s32.totalorder %s14, 3
      %p118 = pnand %p116, %p117
      %p119 = pneg %p118
      // Predicated region
      $region9: #{tpu_custom_call.1} parent=5 // pred_check
        _
      $region10: #{tpu_custom_call.1} parent=5 // pred_check_branch
        %121 = sbr.rel (%p118) target = $region12
      $region11: #{tpu_custom_call.1} parent=5 // pred_region
        %s122 = ssub.s32 %s14, 1
        // Predicated region
        $region13: #{tpu_custom_call.1} parent=11 // pred_check
          %p123 = pneg %p35
        $region14: #{tpu_custom_call.1} parent=11 // pred_check_branch
          %125 = sbr.rel (%p123) target = $region16
        $region15: #{tpu_custom_call.1} parent=11 // pred_region
          %127 = vsyncadd [#allocation8], 0
          %s128 = sshll.u32 %s0, 4
          %s129 = int_to_ptr.hbm [resolvable:$true] %s128
          %s130 = sshll.u32 [#allocation7], 4
          %s131 = int_to_ptr.vmem [resolvable:$true] %s130
          %136 = dma.hbm_to_vmem [thread:$0]  %s129, 256, %s131, [#allocation8], 128, 128, 8
        $region16: #{tpu_custom_call.1} parent=11 // pred_fallthru
          _
      $region12: #{tpu_custom_call.1} parent=5 // pred_fallthru
        _
      %p137 = scmp.lt.s32.totalorder %s14, 2
      // Predicated region
      $region17: #{tpu_custom_call.1} parent=5 // pred_check
        %p138 = pneg %p137
      $region18: #{tpu_custom_call.1} parent=5 // pred_check_branch
        %140 = sbr.rel (%p138) target = $region20
      $region19: #{tpu_custom_call.1} parent=5 // pred_region
        // Predicated region
        $region21: #{tpu_custom_call.1} parent=19 // pred_check
          %p141 = pneg %p55
        $region22: #{tpu_custom_call.1} parent=19 // pred_check_branch
          %143 = sbr.rel (%p141) target = $region24
        $region23: #{tpu_custom_call.1} parent=19 // pred_region
          %s144 = sand.u32 %s14, 1
          %s145 = scalar_lea.sflag [#allocation11], %s144
          %s146 = sand.u32 %s45, 1
          %s147 = smul.addr %s146, 32
          %s148 = scalar_lea.vmem [#allocation10], %s147
          %150 = vsyncadd %s145, 0
          %s151 = smul.addr %s14, 8
          %s152 = scalar_lea.hbm %s1, %s151
          %s153 = sshll.u32 %s152, 4
          %s154 = int_to_ptr.hbm [resolvable:$true] %s153
          %s155 = sshll.u32 %s148, 4
          %s156 = int_to_ptr.vmem [resolvable:$true] %s155
          %161 = dma.hbm_to_vmem [thread:$0]  %s154, 512, %s156, %s145, 256, 128, 8
        $region24: #{tpu_custom_call.1} parent=19 // pred_fallthru
          _
        // Predicated region
        $region25: #{tpu_custom_call.1} parent=19 // pred_check
          %p162 = pneg %p81
        $region26: #{tpu_custom_call.1} parent=19 // pred_check_branch
          %164 = sbr.rel (%p162) target = $region28
        $region27: #{tpu_custom_call.1} parent=19 // pred_region
          %s165 = sand.u32 %s14, 1
          %s166 = scalar_lea.sflag [#allocation11], %s165
          %s167 = sand.u32 %s71, 1
          %s168 = scalar_lea.vmem [#allocation12], %s167
          %170 = vsyncadd %s166, 0
          %s171 = scalar_lea.hbm %s2, %s14
          %s173 = sshll.u32 %s171, 4
          %s174 = int_to_ptr.hbm [resolvable:$true] %s173
          %s175 = sshll.u32 %s168, 4
          %s176 = int_to_ptr.vmem [resolvable:$true] %s175
          %178 = dma.hbm_to_vmem [thread:$0]  %s174, 16, %s176, %s166
        $region28: #{tpu_custom_call.1} parent=19 // pred_fallthru
          _
      $region20: #{tpu_custom_call.1} parent=5 // pred_fallthru
        _
      %p179 = scmp.le.s32.totalorder 1, %s14
      %p180 = scmp.lt.s32.totalorder %s14, 3
      %p181 = pnand %p179, %p180
      %p182 = pneg %p181
      // Predicated region
      $region29: #{tpu_custom_call.1} parent=5 // pred_check
        _
      $region30: #{tpu_custom_call.1} parent=5 // pred_check_branch
        %184 = sbr.rel (%p181) target = $region32
      $region31: #{tpu_custom_call.1} parent=5 // pred_region
        %s185 = ssub.s32 %s14, 1
        // Predicated region
        $region33: #{tpu_custom_call.1} parent=31 // pred_check
          %p186 = pneg %p35
        $region34: #{tpu_custom_call.1} parent=31 // pred_check_branch
          %188 = sbr.rel (%p186) target = $region36
        $region35: #{tpu_custom_call.1} parent=31 // pred_region
          %190 = dma.done [#allocation8], 256
        $region36: #{tpu_custom_call.1} parent=31 // pred_fallthru
          _
        %s191 = sand.u32 %s19, 1
        %s192 = scalar_lea.sflag [#allocation11], %s191
        %s193 = sand.u32 %s48, 1
        %s194 = smul.addr %s193, 32
        %s195 = scalar_lea.vmem [#allocation10], %s194
        // Predicated region
        $region37: #{tpu_custom_call.1} parent=31 // pred_check
          %p196 = pneg %p61
        $region38: #{tpu_custom_call.1} parent=31 // pred_check_branch
          %198 = sbr.rel (%p196) target = $region40
        $region39: #{tpu_custom_call.1} parent=31 // pred_region
          %200 = dma.done %s192, 512
        $region40: #{tpu_custom_call.1} parent=31 // pred_fallthru
          _
        %s201 = sand.u32 %s19, 1
        %s202 = scalar_lea.sflag [#allocation11], %s201
        %s203 = sand.u32 %s74, 1
        %s204 = scalar_lea.vmem [#allocation12], %s203
        // Predicated region
        $region41: #{tpu_custom_call.1} parent=31 // pred_check
          %p205 = pneg %p87
        $region42: #{tpu_custom_call.1} parent=31 // pred_check_branch
          %207 = sbr.rel (%p205) target = $region44
        $region43: #{tpu_custom_call.1} parent=31 // pred_region
          %209 = dma.done %s202, 16
        $region44: #{tpu_custom_call.1} parent=31 // pred_fallthru
          _
        %p210 = pneg %p35
        %p211 = pneg %p32
        %s212 = sand.u32 %s19, 1
        %s213 = scalar_lea.sflag [#allocation11], %s212
        %s214 = sand.u32 %s48, 1
        %s215 = smul.addr %s214, 32
        %s216 = scalar_lea.vmem [#allocation10], %s215
        %p217 = pneg %p61
        %p218 = pneg %p58
        %s219 = sand.u32 %s19, 1
        %s220 = scalar_lea.sflag [#allocation11], %s219
        %s221 = sand.u32 %s74, 1
        %s222 = scalar_lea.vmem [#allocation12], %s221
        %p223 = pneg %p87
        %p224 = pneg %p84
        %p225 = pneg %p108
        %p226 = pneg %p105
        %p227 = scmp.eq.s32.totalorder %s19, 0
        // Predicated region
        $region45: #{tpu_custom_call.1} parent=31 // pred_check
          %p228 = pneg %p227
        $region46: #{tpu_custom_call.1} parent=31 // pred_check_branch
          %230 = sbr.rel (%p228) target = $region48
        $region47: #{tpu_custom_call.1} parent=31 // pred_region
          %231 = vst [vmem:[#allocation2] sm:$0xff] 0.0
          %232 = vst [vmem:[#allocation3] sm:$0x1] 0.0
          %233 = vst [vmem:[#allocation4] sm:$0x1] 0.0
          %vm234 = vcmask 64512
          %235 = vst.msk [vmem:[#allocation5] sm:$0xff] %vm234, 0.0
          %236 = vst.msk [vmem:[#allocation6] sm:$0xff] %vm234, 0.0
          %vm237 = vcmask 0
          %238 = vst.msk [vmem:[#allocation13] sm:$0x1] %vm237, 0.0
        $region48: #{tpu_custom_call.1} parent=31 // pred_fallthru
          _
        %v239 = vld [vmem:[#allocation7] sm:$0xff]
        %v240 = vld [vmem:[#allocation7 + $0x8] sm:$0xff]
        %v241 = vld [vmem:[%s195] sm:$0xff]
        %v242 = vld [vmem:[%s195 + $0x8] sm:$0xff]
        %v243 = vld [vmem:[%s195 + $0x10] sm:$0xff]
        %v244 = vld [vmem:[%s195 + $0x18] sm:$0xff]
        %v245 = vld [vmem:[%s204] sm:$0x1]
        %v247 = vperm.slane %v245, 0
        %vm249 = vcmask 261120
        %v251 = vsel %vm249, %v239, 0
        %v254 = vsel %vm249, %v240, 0
        %256 = vmatpush.msra.mxu0 0.0
        %257 = vmatpush.msra.mxu0 0.0
        %258 = vmatpush.msra.mxu0 0.0
        %259 = vmatpush.msra.mxu0 0.0
        %260 = vmatpush.msra.mxu0 0.0
        %261 = vmatpush.msra.mxu0 0.0
        %262 = vmatpush.msra.mxu0 0.0
        %263 = vmatpush.msra.mxu0 0.0
        %264 = vmatpush.msra.mxu0 0.0
        %265 = vmatpush.msra.mxu0 0.0
        %266 = vmatpush.msra.mxu0 0.0
        %267 = vmatpush.msra.mxu0 0.0
        %268 = vmatpush.msra.mxu0 %v244
        %269 = vmatpush.msra.mxu0 %v243
        %270 = vmatpush.msra.mxu0 %v242
        %271 = vmatpush.msra.mxu0 %v241
        %272 = vmatmul.f32.gmra.mxu0 %v251
        %v273 = vpop.f32.mrf.mxu0
        %v274 = vadd.f32 %v247, %v273
        %275 = vmatmul.f32.gmra.mxu0 %v254
        %v276 = vpop.f32.mrf.mxu0
        %v277 = vadd.f32 %v247, %v276
        %278 = vdwg.mxu0
        %v279 = vsub.f32 %v274, %v277
        %v280 = vld [vmem:[#allocation2] sm:$0xff]
        %v281 = vmul.f32 %v279, %v279
        %v282 = vadd.f32 %v280, %v281
        %283 = vst [vmem:[#allocation2] sm:$0xff] %v282
        %v284 = vrot.slane %v274, 4
        %v285 = vadd.f32 %v274, %v284
        %v286 = vrot.slane %v285, 2
        %v287 = vadd.f32 %v285, %v286
        %v288 = vrot.slane %v287, 1
        %v289 = vadd.f32 %v287, %v288
        %v290 = vrcp.pop 8.0
        %v291 = vmul.f32 8.0, %v290
        %v292 = vsub.f32 1.0, %v291
        %v293 = vmul.f32 %v290, %v292
        %v294 = vadd.f32 %v290, %v293
        %vm295 = vweird.f32 %v290
        %v296 = vsel %vm295, %v290, %v294
        %v297 = vmul.f32 %v289, %v296
        %v298 = vsub.f32 %v274, %v297
        %v299 = vmul.f32 %v298, %v298
        %v300 = vrot.slane %v299, 4
        %v301 = vadd.f32 %v299, %v300
        %v302 = vrot.slane %v301, 2
        %v303 = vadd.f32 %v301, %v302
        %v304 = vrot.slane %v303, 1
        %v305 = vadd.f32 %v303, %v304
        %v306 = vmul.f32 %v305, 0.14285715
        %v307 = vld [vmem:[#allocation3] sm:$0x1]
        %v308 = vsub.f32 1.0, %v306
        %v309 = vmax.f32 %v308, 0.0
        %v310 = vadd.f32 %v307, %v309
        %311 = vst [vmem:[#allocation3] sm:$0x1] %v310
        %v312 = vrot.slane %v277, 4
        %v313 = vadd.f32 %v277, %v312
        %v314 = vrot.slane %v313, 2
        %v315 = vadd.f32 %v313, %v314
        %v316 = vrot.slane %v315, 1
        %v317 = vadd.f32 %v315, %v316
        %v318 = vmul.f32 %v317, %v296
        %v319 = vsub.f32 %v277, %v318
        %v320 = vmul.f32 %v319, %v319
        %v321 = vrot.slane %v320, 4
        %v322 = vadd.f32 %v320, %v321
        %v323 = vrot.slane %v322, 2
        %v324 = vadd.f32 %v322, %v323
        %v325 = vrot.slane %v324, 1
        %v326 = vadd.f32 %v324, %v325
        %v327 = vmul.f32 %v326, 0.14285715
        %v328 = vld [vmem:[#allocation4] sm:$0x1]
        %v329 = vsub.f32 1.0, %v327
        %v330 = vmax.f32 %v329, 0.0
        %v331 = vadd.f32 %v328, %v330
        %332 = vst [vmem:[#allocation4] sm:$0x1] %v331
        %v333 = vld [vmem:[#allocation5] sm:$0xff]
        %334 = vmatpush.xpose.msra.mxu0 0.0
        %335 = vmatpush.xpose.msra.mxu0 0.0
        %336 = vmatpush.xpose.msra.mxu0 0.0
        %337 = vmatpush.xpose.msra.mxu0 0.0
        %338 = vmatpush.xpose.msra.mxu0 0.0
        %339 = vmatpush.xpose.msra.mxu0 0.0
        %340 = vmatpush.xpose.msra.mxu0 0.0
        %341 = vmatpush.xpose.msra.mxu0 0.0
        %342 = vmatpush.xpose.msra.mxu0 0.0
        %343 = vmatpush.xpose.msra.mxu0 0.0
        %344 = vmatpush.xpose.msra.mxu0 0.0
        %345 = vmatpush.xpose.msra.mxu0 0.0
        %346 = vmatpush.xpose.msra.mxu0 0.0
        %347 = vmatpush.xpose.msra.mxu0 0.0
        %348 = vmatpush.xpose.msra.mxu0 0.0
        %349 = vmatpush.xpose.msra.mxu0 %v298
        %350 = vmatmul.f32.gmra.mxu0 %v298
        %v351 = vpop.f32.mrf.mxu0
        %v352 = vadd.f32 0.0, %v351
        %353 = vdwg.mxu0
        %v354 = vadd.f32 %v333, %v352
        %vm355 = vcmask 64512
        %356 = vst.msk [vmem:[#allocation5] sm:$0xff] %vm355, %v354
        %v357 = vld [vmem:[#allocation6] sm:$0xff]
        %358 = vmatpush.xpose.msra.mxu0 0.0
        %359 = vmatpush.xpose.msra.mxu0 0.0
        %360 = vmatpush.xpose.msra.mxu0 0.0
        %361 = vmatpush.xpose.msra.mxu0 0.0
        %362 = vmatpush.xpose.msra.mxu0 0.0
        %363 = vmatpush.xpose.msra.mxu0 0.0
        %364 = vmatpush.xpose.msra.mxu0 0.0
        %365 = vmatpush.xpose.msra.mxu0 0.0
        %366 = vmatpush.xpose.msra.mxu0 0.0
        %367 = vmatpush.xpose.msra.mxu0 0.0
        %368 = vmatpush.xpose.msra.mxu0 0.0
        %369 = vmatpush.xpose.msra.mxu0 0.0
        %370 = vmatpush.xpose.msra.mxu0 0.0
        %371 = vmatpush.xpose.msra.mxu0 0.0
        %372 = vmatpush.xpose.msra.mxu0 0.0
        %373 = vmatpush.xpose.msra.mxu0 %v319
        %374 = vmatmul.f32.gmra.mxu0 %v319
        %v375 = vpop.f32.mrf.mxu0
        %v376 = vadd.f32 0.0, %v375
        %377 = vdwg.mxu0
        %v378 = vadd.f32 %v357, %v376
        %379 = vst.msk [vmem:[#allocation6] sm:$0xff] %vm355, %v378
        %p380 = scmp.eq.s32.totalorder %s19, 1
        // Predicated region
        $region49: #{tpu_custom_call.1} parent=31 // pred_check
          %p381 = pneg %p380
        $region50: #{tpu_custom_call.1} parent=31 // pred_check_branch
          %383 = sbr.rel (%p381) target = $region52
        $region51: #{tpu_custom_call.1} parent=31 // pred_region
          %v384 = vld [vmem:[#allocation2] sm:$0xff]
          %385 = vadd.xlane.f32.xlu0 %v384
          %v386 = vpop.xlane.xlu0 %385
          %v387 = vrot.slane %v386, 4
          %v388 = vadd.f32 %v386, %v387
          %v389 = vrot.slane %v388, 2
          %v390 = vadd.f32 %v388, %v389
          %v391 = vrot.slane %v390, 1
          %v392 = vadd.f32 %v390, %v391
          %s393 = vtos %v392
          %v394 = vrcp.pop 2048.0
          %v395 = vmul.f32 2048.0, %v394
          %v396 = vsub.f32 1.0, %v395
          %v397 = vmul.f32 %v394, %v396
          %v398 = vadd.f32 %v394, %v397
          %vm399 = vweird.f32 %v394
          %v400 = vsel %vm399, %v394, %v398
          %s401 = vtos %v400
          %s402 = smul.f32 %s393, %s401
          %v403 = vld [vmem:[#allocation3] sm:$0x1]
          %vm404 = vcmask 1040384
          %v405 = vsel %vm404, %v403, 0.0
          %406 = vadd.xlane.f32.xlu0 %v405
          %v407 = vpop.xlane.xlu0 %406
          %v408 = vrot.slane %v407, 4
          %v409 = vadd.f32 %v407, %v408
          %v410 = vrot.slane %v409, 2
          %v411 = vadd.f32 %v409, %v410
          %v412 = vrot.slane %v411, 1
          %v413 = vadd.f32 %v411, %v412
          %s414 = vtos %v413
          %v415 = vld [vmem:[#allocation4] sm:$0x1]
          %v416 = vsel %vm404, %v415, 0.0
          %417 = vadd.xlane.f32.xlu0 %v416
          %v418 = vpop.xlane.xlu0 %417
          %v419 = vrot.slane %v418, 4
          %v420 = vadd.f32 %v418, %v419
          %v421 = vrot.slane %v420, 2
          %v422 = vadd.f32 %v420, %v421
          %v423 = vrot.slane %v422, 1
          %v424 = vadd.f32 %v422, %v423
          %s425 = vtos %v424
          %s426 = sadd.f32 %s414, %s425
          %v427 = vrcp.pop 256.0
          %v428 = vmul.f32 256.0, %v427
          %v429 = vsub.f32 1.0, %v428
          %v430 = vmul.f32 %v427, %v429
          %v431 = vadd.f32 %v427, %v430
          %vm432 = vweird.f32 %v427
          %v433 = vsel %vm432, %v427, %v431
          %s434 = vtos %v433
          %s435 = smul.f32 %s426, %s434
          %v436 = vlaneseq
          %v437 = vshrl.u32 %v436, 7
          %v438 = vlaneseq
          %v439 = vand.u32 %v438, 127
          %vm440 = vcmp.ne.s32.totalorder %v437, %v439
          %v441 = vld [vmem:[#allocation5] sm:$0xff]
          %v442 = vmul.f32 %v441, 0.14285715
          %v443 = vsel %vm440, %v442, 0.0
          %v444 = vmul.f32 %v443, %v443
          %v445 = vsel %vm355, %v444, 0.0
          %446 = vadd.xlane.f32.xlu0 %v445
          %v447 = vpop.xlane.xlu0 %446
          %v448 = vrot.slane %v447, 4
          %v449 = vadd.f32 %v447, %v448
          %v450 = vrot.slane %v449, 2
          %v451 = vadd.f32 %v449, %v450
          %v452 = vrot.slane %v451, 1
          %v453 = vadd.f32 %v451, %v452
          %s454 = vtos %v453
          %v455 = vrcp.pop 256.0
          %v456 = vmul.f32 256.0, %v455
          %v457 = vsub.f32 1.0, %v456
          %v458 = vmul.f32 %v455, %v457
          %v459 = vadd.f32 %v455, %v458
          %vm460 = vweird.f32 %v455
          %v461 = vsel %vm460, %v455, %v459
          %s462 = vtos %v461
          %s463 = smul.f32 %s454, %s462
          %v464 = vld [vmem:[#allocation6] sm:$0xff]
          %v465 = vmul.f32 %v464, 0.14285715
          %v466 = vsel %vm440, %v465, 0.0
          %v467 = vmul.f32 %v466, %v466
          %v468 = vsel %vm355, %v467, 0.0
          %469 = vadd.xlane.f32.xlu0 %v468
          %v470 = vpop.xlane.xlu0 %469
          %v471 = vrot.slane %v470, 4
          %v472 = vadd.f32 %v470, %v471
          %v473 = vrot.slane %v472, 2
          %v474 = vadd.f32 %v472, %v473
          %v475 = vrot.slane %v474, 1
          %v476 = vadd.f32 %v474, %v475
          %s477 = vtos %v476
          %v478 = vrcp.pop 256.0
          %v479 = vmul.f32 256.0, %v478
          %v480 = vsub.f32 1.0, %v479
          %v481 = vmul.f32 %v478, %v480
          %v482 = vadd.f32 %v478, %v481
          %vm483 = vweird.f32 %v478
          %v484 = vsel %vm483, %v478, %v482
          %s485 = vtos %v484
          %s486 = smul.f32 %s477, %s485
          %s487 = sadd.f32 %s463, %s486
          %s488 = smul.f32 %s402, 25.0
          %s489 = smul.f32 %s435, 25.0
          %s490 = sadd.f32 %s488, %s489
          %s491 = sadd.f32 %s490, %s487
          %v492 = vstv %s491
          %vm493 = vcmask 0
          %494 = vst.msk [vmem:[#allocation13] sm:$0x1] %vm493, %v492
        $region52: #{tpu_custom_call.1} parent=31 // pred_fallthru
          _
        // Predicated region
        $region53: #{tpu_custom_call.1} parent=31 // pred_check
          %p495 = pneg %p105
        $region54: #{tpu_custom_call.1} parent=31 // pred_check_branch
          %497 = sbr.rel (%p495) target = $region56
        $region55: #{tpu_custom_call.1} parent=31 // pred_region
          %499 = vsyncadd [#allocation9], 0
          %s501 = sshll.u32 [#allocation13], 4
          %s502 = int_to_ptr.vmem [resolvable:$true] %s501
          %s503 = sshll.u32 %s3, 4
          %s504 = int_to_ptr.hbm [resolvable:$true] %s503
          %506 = dma.vmem_to_hbm [thread:$0]  %s502, 16, %s504, [#allocation9]
        $region56: #{tpu_custom_call.1} parent=31 // pred_fallthru
          _
        // Predicated region
        $region57: #{tpu_custom_call.1} parent=31 // pred_check
          %p507 = pneg %p105
        $region58: #{tpu_custom_call.1} parent=31 // pred_check_branch
          %509 = sbr.rel (%p507) target = $region60
        $region59: #{tpu_custom_call.1} parent=31 // pred_region
          %511 = dma.done [#allocation9], 16
        $region60: #{tpu_custom_call.1} parent=31 // pred_fallthru
          _
      $region32: #{tpu_custom_call.1} parent=5 // pred_fallthru
        _
      %p512 = scmp.le.s32.totalorder 2, %s14
      // Predicated region
      $region61: #{tpu_custom_call.1} parent=5 // pred_check
        %p513 = pneg %p512
      $region62: #{tpu_custom_call.1} parent=5 // pred_check_branch
        %515 = sbr.rel (%p513) target = $region64
      $region63: #{tpu_custom_call.1} parent=5 // pred_region
        %s516 = ssub.s32 %s14, 2
      $region64: #{tpu_custom_call.1} parent=5 // pred_fallthru
        _
    $region6: #{tpu_custom_call.1} parent=1 // loop_footer
      %s18 = sadd.s32 1, %s14
    $region7: #{tpu_custom_call.1} parent=1 // loop_footer_branch
      %13 = sbr.rel target = $region3
    $region8: #{tpu_custom_call.1} parent=1 // loop_exit
      _
    %517 = vsyncpa [#allocation8], 1
    %s518 = scalar_lea.sflag [#allocation8], 1
    %519 = vsyncpa %s518, 1
    %520 = vsyncpa [#allocation11], 1
    %s521 = scalar_lea.sflag [#allocation11], 1
    %522 = vsyncpa %s521, 1
    %523 = vsyncpa [#allocation9], 1
    %s524 = scalar_lea.sflag [#allocation9], 1
    %525 = vsyncpa %s524, 1

</llo_original>
